<compile_context>
chip_gen: v7x
topology: tpu7x:2x2x1
jax: 0.10.0
libtpu: 0.0.40
codegen_flags: <defaults>
</compile_context>

<pallas_src>
import jax
import jax.numpy as jnp
from jax.experimental import pallas as pl
from jax.experimental.pallas import tpu as pltpu

IN_FEATURES = 10
OUT_FEATURES = 5
OUT_PAD = 128  # pad the output/lane dim to one full vreg lane width


def _linear_kernel(x_ref, w_ref, b_ref, o_ref):
    # Single invocation, everything already resident in VMEM.
    # x: [B, IN], w: [IN, OUT_PAD], b: [1, OUT_PAD] -> o: [B, OUT_PAD]
    y = jnp.dot(x_ref[...], w_ref[...], preferred_element_type=jnp.float32)
    o_ref[...] = (y + b_ref[...]).astype(o_ref.dtype)


def prepare_fc_params(weight, bias):
    """One-time parameter prep (call once, NOT per forward).

    PyTorch nn.Linear stores weight as [out, in]; transpose once to [in, out]
    and zero-pad the out (lane) dimension to 128 so the kernel's output tile is
    lane-dense (single unmasked vst, aligned MXU result pop).
    """
    out_f, in_f = weight.shape
    w_pad = jnp.zeros((in_f, OUT_PAD), jnp.float32).at[:, :out_f].set(weight.T)
    b_pad = jnp.zeros((1, OUT_PAD), jnp.float32).at[0, :out_f].set(bias)
    return w_pad, b_pad


@jax.jit
def simple_model_forward(x, w_pad, b_pad):
    """y = fc(x) = x @ W.T + b.

    x:     [B, 10]   float32
    w_pad: [10, 128] float32 (pre-transposed, lane-padded weight)
    b_pad: [1, 128]  float32 (lane-padded bias)
    returns [B, 5] float32
    """
    B, _ = x.shape
    y_pad = pl.pallas_call(
        _linear_kernel,
        out_shape=jax.ShapeDtypeStruct((B, OUT_PAD), jnp.float32),
        in_specs=[
            pl.BlockSpec(memory_space=pltpu.MemorySpace.VMEM),
            pl.BlockSpec(memory_space=pltpu.MemorySpace.VMEM),
            pl.BlockSpec(memory_space=pltpu.MemorySpace.VMEM),
        ],
        out_specs=pl.BlockSpec(memory_space=pltpu.MemorySpace.VMEM),
        cost_estimate=pl.CostEstimate(
            flops=2 * 8 * IN_FEATURES * OUT_PAD,
            transcendentals=0,
            bytes_accessed=4 * (8 * IN_FEATURES + IN_FEATURES * OUT_PAD
                                + OUT_PAD + 8 * OUT_PAD),
        ),
    )(x, w_pad, b_pad)
    # Strip lane padding outside the kernel (cheap slice, fused under jit).
    return y_pad[:, :OUT_FEATURES]
    # TODO(synk): if B ever grows large, add a batch-tiled path
    # (grid=(cdiv(B, TB),) with "parallel" semantics, W/bias pinned in VMEM,
    # bf16 MXU inputs) — pointless at B=8.


def _init_linear_params(key, in_features, out_features):
    # Deterministic init mirroring nn.Linear default: U(-1/sqrt(in), 1/sqrt(in)).
    kw, kb = jax.random.split(key)
    bound = 1.0 / jnp.sqrt(jnp.float32(in_features))
    w = jax.random.uniform(kw, (out_features, in_features), jnp.float32,
                           minval=-bound, maxval=bound)
    b = jax.random.uniform(kb, (out_features,), jnp.float32,
                           minval=-bound, maxval=bound)
    return w, b


if __name__ == "__main__":
    key = jax.random.PRNGKey(0)
    k_x, k_fc = jax.random.split(key)

    B = 8  # multiple of 8 keeps the batch sublane-aligned
    x = jax.random.normal(k_x, (B, IN_FEATURES), jnp.float32)
    fc_w, fc_b = _init_linear_params(k_fc, IN_FEATURES, OUT_FEATURES)

    # One-time parameter prep (transpose + lane padding), outside the hot path.
    w_pad, b_pad = prepare_fc_params(fc_w, fc_b)

    y = jax.block_until_ready(simple_model_forward(x, w_pad, b_pad))

    # Sanity check against plain-JAX reference of the PyTorch module.
    y_ref = x @ fc_w.T + fc_b
    assert y.shape == (B, OUT_FEATURES)
    assert jnp.allclose(y, y_ref, atol=1e-5, rtol=1e-5)

    print("KERNEL_OK")
</pallas_src>

<mosaic_0001>
module attributes {stable_mosaic.version = 11 : i64} {
  func.func @_linear_kernel(%arg0: memref<8x10xf32, #tpu.memory_space<vmem>>, %arg1: memref<10x128xf32, #tpu.memory_space<vmem>>, %arg2: memref<1x128xf32, #tpu.memory_space<vmem>>, %arg3: memref<8x128xf32, #tpu.memory_space<vmem>>) attributes {dimension_semantics = [], scalar_prefetch = 0 : i64, scratch_operands = 0 : i64, tpu.core_type = #tpu.core_type<tc>} {
    %c0 = arith.constant 0 : index
    %c0_0 = arith.constant 0 : index
    %0 = vector.load %arg0[%c0, %c0_0] : memref<8x10xf32, #tpu.memory_space<vmem>>, vector<8x10xf32>
    %c0_1 = arith.constant 0 : index
    %c0_2 = arith.constant 0 : index
    %1 = vector.load %arg1[%c0_1, %c0_2] : memref<10x128xf32, #tpu.memory_space<vmem>>, vector<10x128xf32>
    %cst = arith.constant dense<0.000000e+00> : vector<8x128xf32>
    %2 = tpu.matmul %0, %1, %cst {dimension_numbers = #tpu.dot_dimension_numbers<[1], [0], [0], [1], [0, 0, 1, 1], [], []>} : vector<8x10xf32>, vector<10x128xf32>, vector<8x128xf32> -> vector<8x128xf32>
    %c0_3 = arith.constant 0 : index
    %c0_4 = arith.constant 0 : index
    %3 = vector.load %arg2[%c0_3, %c0_4] : memref<1x128xf32, #tpu.memory_space<vmem>>, vector<1x128xf32>
    %4 = vector.broadcast %3 : vector<1x128xf32> to vector<8x128xf32>
    %5 = arith.addf %2, %4 : vector<8x128xf32>
    %c0_5 = arith.constant 0 : index
    %c0_6 = arith.constant 0 : index
    %6 = vector.load %arg3[%c0_5, %c0_6] : memref<8x128xf32, #tpu.memory_space<vmem>>, vector<8x128xf32>
    tpu.vector_store %arg3[%c0_5, %c0_6], %5 {strides = array<i32>} : memref<8x128xf32, #tpu.memory_space<vmem>>, vector<8x128xf32>,
    return
  }
}

</mosaic_0001>

<llo_original>
// kernel: simple_model_forward.1
$region0: #{simple_model_forward.1}
  #allocation0 [shape = 'u32[]', space=smem, size = 0x4, offset = 0x4, fixed_abs, tag = 'smem constant byte address 0x4 - core index']
  #allocation1 [shape = 'u32[144,128]{1,0:T(1,128)}', space=vmem, size = 0x12000, scoped, tag = 'internal scratch']
  %s0 = inlined_call_operand.hbm [shape: f32[8,10], index: 0, kind: input, shape index: {}]
  %s1 = inlined_call_operand.hbm [shape: f32[10,128], index: 1, kind: input, shape index: {}]
  %s2 = inlined_call_operand.vmem [shape: f32[1,128], index: 2, kind: input, shape index: {}]
  %s3 = inlined_call_operand.hbm [shape: f32[8,128], index: 3, kind: output, shape index: {}]
  %s4 = sld [smem:[#allocation0]]
  $region30: #{simple_model_forward.1} parent=0
    _
  %s6 = ssub.s32 1, %s4
  %s7 = scalar_select 0, %s6, %s4
  $region1: #{simple_model_forward.1} parent=0
    #allocation2 [shape = 'u8[4096]{0}', space=vmem, size = 0x1000, scoped, tag = 'input window, operand 0, single buffered']
    #allocation3 [shape = 's32[1]{0}', space=sflag, size = 0x4, scoped, tag = 'scoped memory for simple_model_forward.1']
    #allocation4 [shape = 's32[1]{0}', space=sflag, size = 0x4, scoped, tag = 'scoped memory for simple_model_forward.1']
    #allocation5 [shape = 'u8[8192]{0}', space=vmem, size = 0x2000, scoped, tag = 'input window, operand 1, single buffered']
    #allocation6 [shape = 's32[1]{0}', space=sflag, size = 0x4, scoped, tag = 'scoped memory for simple_model_forward.1']
    #allocation7 [shape = 'u8[4096]{0}', space=vmem, size = 0x1000, scoped, tag = 'output window, operand 0, single buffered']
    %8 = vsyncpa [#allocation3], 0
    %9 = vsyncpa [#allocation6], 0
    %10 = vsyncpa [#allocation4], 0
    // Predicated region
    $region2: #{simple_model_forward.1} parent=1 // pred_check
      _
    $region3: #{simple_model_forward.1} parent=1 // pred_check_branch
      %12 = sbr.rel (0) target = $region5
    $region4: #{simple_model_forward.1} parent=1 // pred_region
      %s14 = ssub.s32 128, 128
      %15 = vsyncadd [#allocation3], %s14
      %s17 = sshll.u32 [#allocation2], 4
      %s18 = int_to_ptr.vmem [resolvable:$true] %s17
      %20 = dma.hbm_to_vmem [thread:$0]  %s0, 128, %s18, [#allocation3]
    $region5: #{simple_model_forward.1} parent=1 // pred_fallthru
      _
    // Predicated region
    $region6: #{simple_model_forward.1} parent=1 // pred_check
      _
    $region7: #{simple_model_forward.1} parent=1 // pred_check_branch
      %22 = sbr.rel (0) target = $region9
    $region8: #{simple_model_forward.1} parent=1 // pred_region
      %s24 = ssub.s32 256, 256
      %25 = vsyncadd [#allocation6], %s24
      %s26 = sshll.u32 [#allocation5], 4
      %s27 = int_to_ptr.vmem [resolvable:$true] %s26
      %32 = dma.hbm_to_vmem [thread:$0]  %s1, 256, %s27, [#allocation6], 128, 128, 8
    $region9: #{simple_model_forward.1} parent=1 // pred_fallthru
      _
    // Predicated region
    $region10: #{simple_model_forward.1} parent=1 // pred_check
      _
    $region11: #{simple_model_forward.1} parent=1 // pred_check_branch
      %34 = sbr.rel (0) target = $region13
    $region12: #{simple_model_forward.1} parent=1 // pred_region
      _
    $region13: #{simple_model_forward.1} parent=1 // pred_fallthru
      _
    // Predicated region
    $region14: #{simple_model_forward.1} parent=1 // pred_check
      _
    $region15: #{simple_model_forward.1} parent=1 // pred_check_branch
      %36 = sbr.rel (0) target = $region17
    $region16: #{simple_model_forward.1} parent=1 // pred_region
      %37 = dma.done [#allocation3], 128
    $region17: #{simple_model_forward.1} parent=1 // pred_fallthru
      _
    // Predicated region
    $region18: #{simple_model_forward.1} parent=1 // pred_check
      _
    $region19: #{simple_model_forward.1} parent=1 // pred_check_branch
      %39 = sbr.rel (0) target = $region21
    $region20: #{simple_model_forward.1} parent=1 // pred_region
      %40 = dma.done [#allocation6], 256
    $region21: #{simple_model_forward.1} parent=1 // pred_fallthru
      _
    %v41 = vld [vmem:[#allocation2] sm:$0xff]
    %v42 = vld [vmem:[#allocation5] sm:$0xff]
    %v43 = vld [vmem:[#allocation5 + $0x8] sm:$0x3]
    %v44 = vld [vmem:[%s2] sm:$0x1]
    %v46 = vlaneseq
    %v47 = vshrl.u32 %v46, 7
    %v48 = vsub.s32 0, %v47
    %v49 = vrot.slane %v44, %v48
    %vm51 = vcmask 80896
    %v53 = vsel %vm51, %v41, 0
    %vm55 = vcmask 1041408
    %v57 = vsel %vm55, %v43, 0
    %59 = vmatprep.subr.mxu0 0.0
    %60 = vmatpush1.msra.mxu0 %v42
    %61 = vmatprep.subr.mxu0 0.0
    %62 = vmatpush1.msra.mxu0 %v57
    %63 = vmatprep.subr.mxu0 0.0
    %64 = vmatpush1.msra.mxu0 0.0
    %65 = vmatprep.subr.mxu0 0.0
    %66 = vmatpush1.msra.mxu0 0.0
    %67 = vmatprep.subr.mxu0 0.0
    %68 = vmatpush1.msra.mxu0 0.0
    %69 = vmatprep.subr.mxu0 0.0
    %70 = vmatpush1.msra.mxu0 0.0
    %71 = vmatprep.subr.mxu0 0.0
    %72 = vmatpush1.msra.mxu0 0.0
    %73 = vmatprep.subr.mxu0 0.0
    %74 = vmatpush1.msra.mxu0 0.0
    %75 = vmatprep.subr.mxu0 0.0
    %76 = vmatpush1.msra.mxu0 0.0
    %77 = vmatprep.subr.mxu0 0.0
    %78 = vmatpush1.msra.mxu0 0.0
    %79 = vmatprep.subr.mxu0 0.0
    %80 = vmatpush1.msra.mxu0 0.0
    %81 = vmatprep.subr.mxu0 0.0
    %82 = vmatpush1.msra.mxu0 0.0
    %83 = vmatprep.subr.mxu0 0.0
    %84 = vmatpush1.msra.mxu0 0.0
    %85 = vmatprep.subr.mxu0 0.0
    %86 = vmatpush1.msra.mxu0 0.0
    %87 = vmatprep.subr.mxu0 0.0
    %88 = vmatpush1.msra.mxu0 0.0
    %89 = vmatprep.subr.mxu0 0.0
    %90 = vmatpush1.msra.mxu0 0.0
    %91 = vmatprep.subr.mxu0 0.0
    %92 = vmatpush1.msra.mxu0 0.0
    %93 = vmatprep.subr.mxu0 0.0
    %94 = vmatpush1.msra.mxu0 0.0
    %95 = vmatprep.subr.mxu0 0.0
    %96 = vmatpush1.msra.mxu0 0.0
    %97 = vmatprep.subr.mxu0 0.0
    %98 = vmatpush1.msra.mxu0 0.0
    %99 = vmatprep.subr.mxu0 0.0
    %100 = vmatpush1.msra.mxu0 0.0
    %101 = vmatprep.subr.mxu0 0.0
    %102 = vmatpush1.msra.mxu0 0.0
    %103 = vmatprep.subr.mxu0 0.0
    %104 = vmatpush1.msra.mxu0 0.0
    %105 = vmatprep.subr.mxu0 0.0
    %106 = vmatpush1.msra.mxu0 0.0
    %107 = vmatprep.subr.mxu0 0.0
    %108 = vmatpush1.msra.mxu0 0.0
    %109 = vmatprep.subr.mxu0 0.0
    %110 = vmatpush1.msra.mxu0 0.0
    %111 = vmatprep.subr.mxu0 0.0
    %112 = vmatpush1.msra.mxu0 0.0
    %113 = vmatprep.subr.mxu0 0.0
    %114 = vmatpush1.msra.mxu0 0.0
    %115 = vmatprep.subr.mxu0 0.0
    %116 = vmatpush1.msra.mxu0 0.0
    %117 = vmatprep.subr.mxu0 0.0
    %118 = vmatpush1.msra.mxu0 0.0
    %119 = vmatprep.subr.mxu0 0.0
    %120 = vmatpush1.msra.mxu0 0.0
    %121 = vmatprep.subr.mxu0 0.0
    %122 = vmatpush1.msra.mxu0 0.0
    %123 = vmatprep.mubr.f32.mxu0 0.0
    %124 = vmatmul.mubr.f32.gmra.mrb[0].mxu0 %v53
    %v125 = vpop.f32.mrb[0].mxu0
    %v126 = vadd.f32 %v49, %v125
    %v127 = vpop.f32.mrb[0].mxu0
    %128 = vdwg.mxu0
    %129 = vst [vmem:[#allocation7] sm:$0xff] %v126
    // Predicated region
    $region22: #{simple_model_forward.1} parent=1 // pred_check
      _
    $region23: #{simple_model_forward.1} parent=1 // pred_check_branch
      %131 = sbr.rel (0) target = $region25
    $region24: #{simple_model_forward.1} parent=1 // pred_region
      %s133 = ssub.s32 128, 128
      %134 = vsyncadd [#allocation4], %s133
      %s136 = sshll.u32 [#allocation7], 4
      %s137 = int_to_ptr.vmem [resolvable:$true] %s136
      %139 = dma.vmem_to_hbm [thread:$0]  %s137, 128, %s3, [#allocation4]
    $region25: #{simple_model_forward.1} parent=1 // pred_fallthru
      _
    // Predicated region
    $region26: #{simple_model_forward.1} parent=1 // pred_check
      _
    $region27: #{simple_model_forward.1} parent=1 // pred_check_branch
      %141 = sbr.rel (0) target = $region29
    $region28: #{simple_model_forward.1} parent=1 // pred_region
      %142 = dma.done [#allocation4], 128
    $region29: #{simple_model_forward.1} parent=1 // pred_fallthru
      _
    %143 = vsyncpa [#allocation3], 1
    %144 = vsyncpa [#allocation6], 1
    %145 = vsyncpa [#allocation4], 1

</llo_original>
